<compile_context>
chip_gen: v7x
topology: tpu7x:2x2x1
jax: 0.10.0
libtpu: 0.0.40
codegen_flags: <defaults>
</compile_context>

<pallas_src>
import jax
import jax.numpy as jnp
from jax.experimental import pallas as pl
from jax.experimental.pallas import tpu as pltpu

INTERMEDIATE_DIM = 16  # stand-in for args.intermediate_dim


def gamma_kernel(xt_ref, h1_ref, h2_ref, h3_ref, h4_ref, o_ref):
    # xt_ref: (1, Nblk)      -- batch on the lane axis
    # h_i:    (out, in)      -- PyTorch layout, used directly as |W| @ y (no .T)
    # o_ref:  (out_dim, Nblk)
    x = xt_ref[...].astype(jnp.float32)                       # (1, Nblk)

    # Layer 1: in_channels == 1, so the contraction is a broadcast multiply on
    # the VPU — no MXU push/pop for a K=1 matmul.
    w1 = jnp.abs(h1_ref[...]).astype(jnp.float32)             # (16, 1)
    y = jnp.tanh(w1 * x)                                      # (16, Nblk)

    # Layers 2..4: lane-dense |W| @ y on the MXU, f32 accumulate, tanh on EUP.
    for h_ref in (h2_ref, h3_ref, h4_ref):
        w = jnp.abs(h_ref[...]).astype(jnp.float32)           # (out, in)
        y = jnp.tanh(jnp.dot(w, y, preferred_element_type=jnp.float32))

    o_ref[...] = y.astype(o_ref.dtype)


def gamma_function(x, h1, h2, h3, h4, *, block_n=1024):
    """x: (N, 1) float.  Returns (N, out_dim) = tanh-MLP with abs(W) weights."""
    n = x.shape[0]
    out_dim = h4.shape[0]

    # Lane axis needs multiples of 128; cap the block at the (rounded-up) batch.
    block_n = min(block_n, pl.cdiv(max(n, 1), 128) * 128)
    n_pad = pl.cdiv(max(n, 1), block_n) * block_n
    grid = (n_pad // block_n,)

    # Wrapper-side layout change: batch onto the lane axis, zero-pad the tail.
    xt = jnp.transpose(x)                                     # (1, N)
    if n_pad != n:
        xt = jnp.pad(xt, ((0, 0), (0, n_pad - n)))

    # Advisory cost hint (per padded column: 1 bcast-mul layer + 3 matmuls + 4 tanh layers).
    flops = n_pad * (16 + 2 * 16 * 16 + 2 * 16 * 16 + 2 * 16 * out_dim)
    transcendentals = n_pad * (3 * 16 + out_dim)
    bytes_accessed = (n_pad * 4 * (1 + out_dim)
                      + 4 * (16 * 1 + 16 * 16 + 16 * 16 + out_dim * 16))

    out_t = pl.pallas_call(
        gamma_kernel,
        out_shape=jax.ShapeDtypeStruct((out_dim, n_pad), x.dtype),
        grid_spec=pltpu.PrefetchScalarGridSpec(
            num_scalar_prefetch=0,
            grid=grid,
            in_specs=[
                pl.BlockSpec((1, block_n), lambda i: (0, i)),       # x^T, blocked over N
                pl.BlockSpec(h1.shape, lambda i: (0, 0)),           # weights stay resident
                pl.BlockSpec(h2.shape, lambda i: (0, 0)),
                pl.BlockSpec(h3.shape, lambda i: (0, 0)),
                pl.BlockSpec(h4.shape, lambda i: (0, 0)),
            ],
            out_specs=pl.BlockSpec((out_dim, block_n), lambda i: (0, i)),
        ),
        compiler_params=pltpu.CompilerParams(
            dimension_semantics=("parallel",),
        ),
        cost_estimate=pl.CostEstimate(
            flops=flops,
            transcendentals=transcendentals,
            bytes_accessed=bytes_accessed,
        ),
    )(xt, h1, h2, h3, h4)

    # Drop padding, back to PyTorch layout (N, out_dim).
    return jnp.transpose(out_t[:, :n])


def init_params(key):
    k1, k2, k3, k4 = jax.random.split(key, 4)
    # H ~ N(0, 0.1), PyTorch (out_channels, in_channels) layout.
    h1 = 0.1 * jax.random.normal(k1, (16, 1), jnp.float32)
    h2 = 0.1 * jax.random.normal(k2, (16, 16), jnp.float32)
    h3 = 0.1 * jax.random.normal(k3, (16, 16), jnp.float32)
    h4 = 0.1 * jax.random.normal(k4, (INTERMEDIATE_DIM, 16), jnp.float32)
    # The module's bias `b` is a parameter but is UNUSED in forward
    # (F.linear is called without bias), so it is omitted here.
    return h1, h2, h3, h4


def reference(x, h1, h2, h3, h4):
    y = x
    for h in (h1, h2, h3, h4):
        y = jnp.tanh(y @ jnp.abs(h).T)
    return y


if __name__ == "__main__":
    key = jax.random.PRNGKey(0)
    kx, kp = jax.random.split(key)
    h1, h2, h3, h4 = init_params(kp)

    # Small case (single grid step): gamma_function's first layer has
    # input_channel=1, so x is (batch, 1).
    n = 8
    x = jax.random.normal(kx, (n, 1), jnp.float32)
    out = jax.block_until_ready(gamma_function(x, h1, h2, h3, h4))
    ref = reference(x, h1, h2, h3, h4)
    assert out.shape == (n, INTERMEDIATE_DIM)
    assert jnp.allclose(out, ref, atol=1e-5, rtol=1e-5)

    # Larger, non-multiple batch: exercises the grid + tail padding path.
    n2 = 300
    x2 = jax.random.normal(jax.random.PRNGKey(1), (n2, 1), jnp.float32)
    out2 = jax.block_until_ready(gamma_function(x2, h1, h2, h3, h4, block_n=128))
    ref2 = reference(x2, h1, h2, h3, h4)
    assert out2.shape == (n2, INTERMEDIATE_DIM)
    assert jnp.allclose(out2, ref2, atol=1e-5, rtol=1e-5)

    print("KERNEL_OK")
</pallas_src>

<mosaic_0001>
module attributes {stable_mosaic.version = 11 : i64} {
  func.func @gamma_kernel(%arg0: i32, %arg1: memref<1x128xf32, #tpu.memory_space<vmem>>, %arg2: memref<16x1xf32, #tpu.memory_space<vmem>>, %arg3: memref<16x16xf32, #tpu.memory_space<vmem>>, %arg4: memref<16x16xf32, #tpu.memory_space<vmem>>, %arg5: memref<16x16xf32, #tpu.memory_space<vmem>>, %arg6: memref<16x128xf32, #tpu.memory_space<vmem>>) attributes {dimension_semantics = [#tpu.dimension_semantics<parallel>], iteration_bounds = array<i64: 1>, scalar_prefetch = 0 : i64, scratch_operands = 0 : i64, tpu.core_type = #tpu.core_type<tc>, window_params = [{transform_indices = @transform_0, window_bounds = array<i64: 1, 128>}, {pipeline_mode = #tpu.pipeline_mode<synchronous>, transform_indices = @transform_1, window_bounds = array<i64: 16, 1>}, {pipeline_mode = #tpu.pipeline_mode<synchronous>, transform_indices = @transform_2, window_bounds = array<i64: 16, 16>}, {pipeline_mode = #tpu.pipeline_mode<synchronous>, transform_indices = @transform_3, window_bounds = array<i64: 16, 16>}, {pipeline_mode = #tpu.pipeline_mode<synchronous>, transform_indices = @transform_4, window_bounds = array<i64: 16, 16>}, {transform_indices = @transform_5, window_bounds = array<i64: 16, 128>}]} {
    %c0 = arith.constant 0 : index
    %c0_0 = arith.constant 0 : index
    %0 = vector.load %arg1[%c0, %c0_0] : memref<1x128xf32, #tpu.memory_space<vmem>>, vector<1x128xf32>
    %c0_1 = arith.constant 0 : index
    %c0_2 = arith.constant 0 : index
    %1 = vector.load %arg2[%c0_1, %c0_2] : memref<16x1xf32, #tpu.memory_space<vmem>>, vector<16x1xf32>
    %2 = math.absf %1 : vector<16x1xf32>
    %3 = vector.broadcast %2 : vector<16x1xf32> to vector<16x128xf32>
    %4 = vector.broadcast %0 : vector<1x128xf32> to vector<16x128xf32>
    %5 = arith.mulf %3, %4 : vector<16x128xf32>
    %6 = math.tanh %5 : vector<16x128xf32>
    %c0_3 = arith.constant 0 : index
    %c0_4 = arith.constant 0 : index
    %7 = vector.load %arg3[%c0_3, %c0_4] : memref<16x16xf32, #tpu.memory_space<vmem>>, vector<16x16xf32>
    %8 = math.absf %7 : vector<16x16xf32>
    %cst = arith.constant dense<0.000000e+00> : vector<16x128xf32>
    %9 = tpu.matmul %8, %6, %cst {dimension_numbers = #tpu.dot_dimension_numbers<[1], [0], [0], [1], [0, 0, 1, 1], [], []>} : vector<16x16xf32>, vector<16x128xf32>, vector<16x128xf32> -> vector<16x128xf32>
    %10 = math.tanh %9 : vector<16x128xf32>
    %c0_5 = arith.constant 0 : index
    %c0_6 = arith.constant 0 : index
    %11 = vector.load %arg4[%c0_5, %c0_6] : memref<16x16xf32, #tpu.memory_space<vmem>>, vector<16x16xf32>
    %12 = math.absf %11 : vector<16x16xf32>
    %cst_7 = arith.constant dense<0.000000e+00> : vector<16x128xf32>
    %13 = tpu.matmul %12, %10, %cst_7 {dimension_numbers = #tpu.dot_dimension_numbers<[1], [0], [0], [1], [0, 0, 1, 1], [], []>} : vector<16x16xf32>, vector<16x128xf32>, vector<16x128xf32> -> vector<16x128xf32>
    %14 = math.tanh %13 : vector<16x128xf32>
    %c0_8 = arith.constant 0 : index
    %c0_9 = arith.constant 0 : index
    %15 = vector.load %arg5[%c0_8, %c0_9] : memref<16x16xf32, #tpu.memory_space<vmem>>, vector<16x16xf32>
    %16 = math.absf %15 : vector<16x16xf32>
    %cst_10 = arith.constant dense<0.000000e+00> : vector<16x128xf32>
    %17 = tpu.matmul %16, %14, %cst_10 {dimension_numbers = #tpu.dot_dimension_numbers<[1], [0], [0], [1], [0, 0, 1, 1], [], []>} : vector<16x16xf32>, vector<16x128xf32>, vector<16x128xf32> -> vector<16x128xf32>
    %18 = math.tanh %17 : vector<16x128xf32>
    %c0_11 = arith.constant 0 : index
    %c0_12 = arith.constant 0 : index
    %19 = vector.load %arg6[%c0_11, %c0_12] : memref<16x128xf32, #tpu.memory_space<vmem>>, vector<16x128xf32>
    tpu.vector_store %arg6[%c0_11, %c0_12], %18 {strides = array<i32>} : memref<16x128xf32, #tpu.memory_space<vmem>>, vector<16x128xf32>,
    return
  }
  func.func @transform_0(%arg0: i32) -> (i32, i32) {
    %c0_i32 = arith.constant 0 : i32
    %c0_i32_0 = arith.constant 0 : i32
    return %c0_i32, %arg0 : i32, i32
  }
  func.func @transform_1(%arg0: i32) -> (i32, i32) {
    %c0_i32 = arith.constant 0 : i32
    %c0_i32_0 = arith.constant 0 : i32
    %c0_i32_1 = arith.constant 0 : i32
    return %c0_i32, %c0_i32_0 : i32, i32
  }
  func.func @transform_2(%arg0: i32) -> (i32, i32) {
    %c0_i32 = arith.constant 0 : i32
    %c0_i32_0 = arith.constant 0 : i32
    %c0_i32_1 = arith.constant 0 : i32
    return %c0_i32, %c0_i32_0 : i32, i32
  }
  func.func @transform_3(%arg0: i32) -> (i32, i32) {
    %c0_i32 = arith.constant 0 : i32
    %c0_i32_0 = arith.constant 0 : i32
    %c0_i32_1 = arith.constant 0 : i32
    return %c0_i32, %c0_i32_0 : i32, i32
  }
  func.func @transform_4(%arg0: i32) -> (i32, i32) {
    %c0_i32 = arith.constant 0 : i32
    %c0_i32_0 = arith.constant 0 : i32
    %c0_i32_1 = arith.constant 0 : i32
    return %c0_i32, %c0_i32_0 : i32, i32
  }
  func.func @transform_5(%arg0: i32) -> (i32, i32) {
    %c0_i32 = arith.constant 0 : i32
    %c0_i32_0 = arith.constant 0 : i32
    return %c0_i32, %arg0 : i32, i32
  }
}

</mosaic_0001>

<llo_original>
// kernel: tpu_custom_call.1
$region0: #{tpu_custom_call.1}
  #allocation0 [shape = 'u32[]', space=smem, size = 0x4, offset = 0x4, fixed_abs, tag = 'smem constant byte address 0x4 - core index']
  #allocation1 [shape = 'u32[144,128]{1,0:T(1,128)}', space=vmem, size = 0x12000, scoped, tag = 'internal scratch']
  %s0 = inlined_call_operand.hbm [shape: f32[1,128], index: 0, kind: input, shape index: {}]
  %s1 = inlined_call_operand.vmem [shape: f32[16,1], index: 1, kind: input, shape index: {}]
  %s2 = inlined_call_operand.vmem [shape: f32[16,16], index: 2, kind: input, shape index: {}]
  %s3 = inlined_call_operand.hbm [shape: f32[16,16], index: 3, kind: input, shape index: {}]
  %s4 = inlined_call_operand.vmem [shape: f32[16,16], index: 4, kind: input, shape index: {}]
  %s5 = inlined_call_operand.hbm [shape: f32[16,128], index: 5, kind: output, shape index: {}]
  %s6 = sld [smem:[#allocation0]]
  $region38: #{tpu_custom_call.1} parent=0
    _
  %s8 = ssub.s32 1, %s6
  %s9 = scalar_select 0, %s8, %s6
  $region1: #{tpu_custom_call.1} parent=0
    #allocation2 [shape = 'u8[512]{0}', space=vmem, size = 0x400, scoped, tag = 'input window, operand 0, single buffered']
    #allocation3 [shape = 's32[1]{0}', space=sflag, size = 0x4, scoped, tag = 'scoped memory for tpu_custom_call.1']
    #allocation4 [shape = 's32[1]{0}', space=sflag, size = 0x4, scoped, tag = 'scoped memory for tpu_custom_call.1']
    #allocation5 [shape = 'u8[8192]{0}', space=vmem, size = 0x2000, scoped, tag = 'input window, operand 3, single buffered']
    #allocation6 [shape = 's32[1]{0}', space=sflag, size = 0x4, scoped, tag = 'scoped memory for tpu_custom_call.1']
    #allocation7 [shape = 'u8[8192]{0}', space=vmem, size = 0x2000, scoped, tag = 'output window, operand 0, single buffered']
    %10 = vsyncpa [#allocation3], 0
    %11 = vsyncpa [#allocation6], 0
    %12 = vsyncpa [#allocation4], 0
    // Predicated region
    $region2: #{tpu_custom_call.1} parent=1 // pred_check
      _
    $region3: #{tpu_custom_call.1} parent=1 // pred_check_branch
      %14 = sbr.rel (0) target = $region5
    $region4: #{tpu_custom_call.1} parent=1 // pred_region
      %s16 = ssub.s32 16, 16
      %17 = vsyncadd [#allocation3], %s16
      %s19 = sshll.u32 [#allocation2], 4
      %s20 = int_to_ptr.vmem [resolvable:$true] %s19
      %22 = dma.hbm_to_vmem [thread:$0]  %s0, 16, %s20, [#allocation3]
    $region5: #{tpu_custom_call.1} parent=1 // pred_fallthru
      _
    // Predicated region
    $region6: #{tpu_custom_call.1} parent=1 // pred_check
      _
    $region7: #{tpu_custom_call.1} parent=1 // pred_check_branch
      %24 = sbr.rel (0) target = $region9
    $region8: #{tpu_custom_call.1} parent=1 // pred_region
      _
    $region9: #{tpu_custom_call.1} parent=1 // pred_fallthru
      _
    // Predicated region
    $region10: #{tpu_custom_call.1} parent=1 // pred_check
      _
    $region11: #{tpu_custom_call.1} parent=1 // pred_check_branch
      %26 = sbr.rel (0) target = $region13
    $region12: #{tpu_custom_call.1} parent=1 // pred_region
      _
    $region13: #{tpu_custom_call.1} parent=1 // pred_fallthru
      _
    // Predicated region
    $region14: #{tpu_custom_call.1} parent=1 // pred_check
      _
    $region15: #{tpu_custom_call.1} parent=1 // pred_check_branch
      %28 = sbr.rel (0) target = $region17
    $region16: #{tpu_custom_call.1} parent=1 // pred_region
      %s30 = ssub.s32 256, 256
      %31 = vsyncadd [#allocation6], %s30
      %s32 = sshll.u32 [#allocation5], 4
      %s33 = int_to_ptr.vmem [resolvable:$true] %s32
      %38 = dma.hbm_to_vmem [thread:$0]  %s3, 256, %s33, [#allocation6], 128, 128, 8
    $region17: #{tpu_custom_call.1} parent=1 // pred_fallthru
      _
    // Predicated region
    $region18: #{tpu_custom_call.1} parent=1 // pred_check
      _
    $region19: #{tpu_custom_call.1} parent=1 // pred_check_branch
      %40 = sbr.rel (0) target = $region21
    $region20: #{tpu_custom_call.1} parent=1 // pred_region
      _
    $region21: #{tpu_custom_call.1} parent=1 // pred_fallthru
      _
    // Predicated region
    $region22: #{tpu_custom_call.1} parent=1 // pred_check
      _
    $region23: #{tpu_custom_call.1} parent=1 // pred_check_branch
      %42 = sbr.rel (0) target = $region25
    $region24: #{tpu_custom_call.1} parent=1 // pred_region
      %43 = dma.done [#allocation3], 16
    $region25: #{tpu_custom_call.1} parent=1 // pred_fallthru
      _
    // Predicated region
    $region26: #{tpu_custom_call.1} parent=1 // pred_check
      _
    $region27: #{tpu_custom_call.1} parent=1 // pred_check_branch
      %45 = sbr.rel (0) target = $region29
    $region28: #{tpu_custom_call.1} parent=1 // pred_region
      %46 = dma.done [#allocation6], 256
    $region29: #{tpu_custom_call.1} parent=1 // pred_fallthru
      _
    %v47 = vld [vmem:[#allocation2] sm:$0x1]
    %v48 = vld [vmem:[%s1] sm:$0xff]
    %v49 = vld [vmem:[%s1 + $0x8] sm:$0xff]
    %v50 = vand.u32 2147483647, %v48
    %v51 = vand.u32 2147483647, %v49
    %53 = vset.pattern.permute.xlu0 0
    %54 = vperm.xlu0 %53, %v50
    %v55 = vpop.permute.xlu0 %54
    %58 = vset.pattern.permute.xlu0 0
    %59 = vperm.xlu0 %58, %v51
    %v60 = vpop.permute.xlu0 %59
    %v63 = vlaneseq
    %v64 = vshrl.u32 %v63, 7
    %v65 = vsub.s32 0, %v64
    %v66 = vrot.slane %v47, %v65
    %v68 = vmul.f32 %v55, %v66
    %v69 = vmul.f32 %v60, %v66
    %v70 = vtanh.pop %v68
    %v71 = vtanh.pop %v69
    %v72 = vld [vmem:[%s2] sm:$0xff]
    %v73 = vld [vmem:[%s2 + $0x8] sm:$0xff]
    %v74 = vand.u32 2147483647, %v72
    %v75 = vand.u32 2147483647, %v73
    %vm76 = vcmask 130048
    %v78 = vsel %vm76, %v74, 0
    %v81 = vsel %vm76, %v75, 0
    %83 = vmatprep.subr.mxu0 0.0
    %84 = vmatpush1.msra.mxu0 %v70
    %85 = vmatprep.subr.mxu0 0.0
    %86 = vmatpush1.msra.mxu0 %v71
    %87 = vmatprep.subr.mxu0 0.0
    %88 = vmatpush1.msra.mxu0 0.0
    %89 = vmatprep.subr.mxu0 0.0
    %90 = vmatpush1.msra.mxu0 0.0
    %91 = vmatprep.subr.mxu0 0.0
    %92 = vmatpush1.msra.mxu0 0.0
    %93 = vmatprep.subr.mxu0 0.0
    %94 = vmatpush1.msra.mxu0 0.0
    %95 = vmatprep.subr.mxu0 0.0
    %96 = vmatpush1.msra.mxu0 0.0
    %97 = vmatprep.subr.mxu0 0.0
    %98 = vmatpush1.msra.mxu0 0.0
    %99 = vmatprep.subr.mxu0 0.0
    %100 = vmatpush1.msra.mxu0 0.0
    %101 = vmatprep.subr.mxu0 0.0
    %102 = vmatpush1.msra.mxu0 0.0
    %103 = vmatprep.subr.mxu0 0.0
    %104 = vmatpush1.msra.mxu0 0.0
    %105 = vmatprep.subr.mxu0 0.0
    %106 = vmatpush1.msra.mxu0 0.0
    %107 = vmatprep.subr.mxu0 0.0
    %108 = vmatpush1.msra.mxu0 0.0
    %109 = vmatprep.subr.mxu0 0.0
    %110 = vmatpush1.msra.mxu0 0.0
    %111 = vmatprep.subr.mxu0 0.0
    %112 = vmatpush1.msra.mxu0 0.0
    %113 = vmatprep.subr.mxu0 0.0
    %114 = vmatpush1.msra.mxu0 0.0
    %115 = vmatprep.subr.mxu0 0.0
    %116 = vmatpush1.msra.mxu0 0.0
    %117 = vmatprep.subr.mxu0 0.0
    %118 = vmatpush1.msra.mxu0 0.0
    %119 = vmatprep.subr.mxu0 0.0
    %120 = vmatpush1.msra.mxu0 0.0
    %121 = vmatprep.subr.mxu0 0.0
    %122 = vmatpush1.msra.mxu0 0.0
    %123 = vmatprep.subr.mxu0 0.0
    %124 = vmatpush1.msra.mxu0 0.0
    %125 = vmatprep.subr.mxu0 0.0
    %126 = vmatpush1.msra.mxu0 0.0
    %127 = vmatprep.subr.mxu0 0.0
    %128 = vmatpush1.msra.mxu0 0.0
    %129 = vmatprep.subr.mxu0 0.0
    %130 = vmatpush1.msra.mxu0 0.0
    %131 = vmatprep.subr.mxu0 0.0
    %132 = vmatpush1.msra.mxu0 0.0
    %133 = vmatprep.subr.mxu0 0.0
    %134 = vmatpush1.msra.mxu0 0.0
    %135 = vmatprep.subr.mxu0 0.0
    %136 = vmatpush1.msra.mxu0 0.0
    %137 = vmatprep.subr.mxu0 0.0
    %138 = vmatpush1.msra.mxu0 0.0
    %139 = vmatprep.subr.mxu0 0.0
    %140 = vmatpush1.msra.mxu0 0.0
    %141 = vmatprep.subr.mxu0 0.0
    %142 = vmatpush1.msra.mxu0 0.0
    %143 = vmatprep.subr.mxu0 0.0
    %144 = vmatpush1.msra.mxu0 0.0
    %145 = vmatprep.subr.mxu0 0.0
    %146 = vmatpush1.msra.mxu0 0.0
    %147 = vmatprep.mubr.f32.mxu0 0.0
    %148 = vmatmul.mubr.f32.gmra.mrb[0].mxu0 %v78
    %v149 = vpop.f32.mrb[0].mxu0
    %v150 = vadd.f32 0.0, %v149
    %v151 = vpop.f32.mrb[0].mxu0
    %152 = vmatprep.mubr.f32.mxu0 0.0
    %153 = vmatmul.mubr.f32.gmra.mrb[0].mxu0 %v81
    %v154 = vpop.f32.mrb[0].mxu0
    %v155 = vadd.f32 0.0, %v154
    %v156 = vpop.f32.mrb[0].mxu0
    %157 = vdwg.mxu0
    %v158 = vtanh.pop %v150
    %v159 = vtanh.pop %v155
    %v160 = vld [vmem:[#allocation5] sm:$0xff]
    %v161 = vld [vmem:[#allocation5 + $0x8] sm:$0xff]
    %v162 = vand.u32 2147483647, %v160
    %v163 = vand.u32 2147483647, %v161
    %v165 = vsel %vm76, %v162, 0
    %v168 = vsel %vm76, %v163, 0
    %170 = vmatprep.subr.mxu0 0.0
    %171 = vmatpush1.msra.mxu0 %v158
    %172 = vmatprep.subr.mxu0 0.0
    %173 = vmatpush1.msra.mxu0 %v159
    %174 = vmatprep.subr.mxu0 0.0
    %175 = vmatpush1.msra.mxu0 0.0
    %176 = vmatprep.subr.mxu0 0.0
    %177 = vmatpush1.msra.mxu0 0.0
    %178 = vmatprep.subr.mxu0 0.0
    %179 = vmatpush1.msra.mxu0 0.0
    %180 = vmatprep.subr.mxu0 0.0
    %181 = vmatpush1.msra.mxu0 0.0
    %182 = vmatprep.subr.mxu0 0.0
    %183 = vmatpush1.msra.mxu0 0.0
    %184 = vmatprep.subr.mxu0 0.0
    %185 = vmatpush1.msra.mxu0 0.0
    %186 = vmatprep.subr.mxu0 0.0
    %187 = vmatpush1.msra.mxu0 0.0
    %188 = vmatprep.subr.mxu0 0.0
    %189 = vmatpush1.msra.mxu0 0.0
    %190 = vmatprep.subr.mxu0 0.0
    %191 = vmatpush1.msra.mxu0 0.0
    %192 = vmatprep.subr.mxu0 0.0
    %193 = vmatpush1.msra.mxu0 0.0
    %194 = vmatprep.subr.mxu0 0.0
    %195 = vmatpush1.msra.mxu0 0.0
    %196 = vmatprep.subr.mxu0 0.0
    %197 = vmatpush1.msra.mxu0 0.0
    %198 = vmatprep.subr.mxu0 0.0
    %199 = vmatpush1.msra.mxu0 0.0
    %200 = vmatprep.subr.mxu0 0.0
    %201 = vmatpush1.msra.mxu0 0.0
    %202 = vmatprep.subr.mxu0 0.0
    %203 = vmatpush1.msra.mxu0 0.0
    %204 = vmatprep.subr.mxu0 0.0
    %205 = vmatpush1.msra.mxu0 0.0
    %206 = vmatprep.subr.mxu0 0.0
    %207 = vmatpush1.msra.mxu0 0.0
    %208 = vmatprep.subr.mxu0 0.0
    %209 = vmatpush1.msra.mxu0 0.0
    %210 = vmatprep.subr.mxu0 0.0
    %211 = vmatpush1.msra.mxu0 0.0
    %212 = vmatprep.subr.mxu0 0.0
    %213 = vmatpush1.msra.mxu0 0.0
    %214 = vmatprep.subr.mxu0 0.0
    %215 = vmatpush1.msra.mxu0 0.0
    %216 = vmatprep.subr.mxu0 0.0
    %217 = vmatpush1.msra.mxu0 0.0
    %218 = vmatprep.subr.mxu0 0.0
    %219 = vmatpush1.msra.mxu0 0.0
    %220 = vmatprep.subr.mxu0 0.0
    %221 = vmatpush1.msra.mxu0 0.0
    %222 = vmatprep.subr.mxu0 0.0
    %223 = vmatpush1.msra.mxu0 0.0
    %224 = vmatprep.subr.mxu0 0.0
    %225 = vmatpush1.msra.mxu0 0.0
    %226 = vmatprep.subr.mxu0 0.0
    %227 = vmatpush1.msra.mxu0 0.0
    %228 = vmatprep.subr.mxu0 0.0
    %229 = vmatpush1.msra.mxu0 0.0
    %230 = vmatprep.subr.mxu0 0.0
    %231 = vmatpush1.msra.mxu0 0.0
    %232 = vmatprep.subr.mxu0 0.0
    %233 = vmatpush1.msra.mxu0 0.0
    %234 = vmatprep.mubr.f32.mxu0 0.0
    %235 = vmatmul.mubr.f32.gmra.mrb[0].mxu0 %v165
    %v236 = vpop.f32.mrb[0].mxu0
    %v237 = vadd.f32 0.0, %v236
    %v238 = vpop.f32.mrb[0].mxu0
    %239 = vmatprep.mubr.f32.mxu0 0.0
    %240 = vmatmul.mubr.f32.gmra.mrb[0].mxu0 %v168
    %v241 = vpop.f32.mrb[0].mxu0
    %v242 = vadd.f32 0.0, %v241
    %v243 = vpop.f32.mrb[0].mxu0
    %244 = vdwg.mxu0
    %v245 = vtanh.pop %v237
    %v246 = vtanh.pop %v242
    %v247 = vld [vmem:[%s4] sm:$0xff]
    %v248 = vld [vmem:[%s4 + $0x8] sm:$0xff]
    %v249 = vand.u32 2147483647, %v247
    %v250 = vand.u32 2147483647, %v248
    %v252 = vsel %vm76, %v249, 0
    %v255 = vsel %vm76, %v250, 0
    %257 = vmatprep.subr.mxu0 0.0
    %258 = vmatpush1.msra.mxu0 %v245
    %259 = vmatprep.subr.mxu0 0.0
    %260 = vmatpush1.msra.mxu0 %v246
    %261 = vmatprep.subr.mxu0 0.0
    %262 = vmatpush1.msra.mxu0 0.0
    %263 = vmatprep.subr.mxu0 0.0
    %264 = vmatpush1.msra.mxu0 0.0
    %265 = vmatprep.subr.mxu0 0.0
    %266 = vmatpush1.msra.mxu0 0.0
    %267 = vmatprep.subr.mxu0 0.0
    %268 = vmatpush1.msra.mxu0 0.0
    %269 = vmatprep.subr.mxu0 0.0
    %270 = vmatpush1.msra.mxu0 0.0
    %271 = vmatprep.subr.mxu0 0.0
    %272 = vmatpush1.msra.mxu0 0.0
    %273 = vmatprep.subr.mxu0 0.0
    %274 = vmatpush1.msra.mxu0 0.0
    %275 = vmatprep.subr.mxu0 0.0
    %276 = vmatpush1.msra.mxu0 0.0
    %277 = vmatprep.subr.mxu0 0.0
    %278 = vmatpush1.msra.mxu0 0.0
    %279 = vmatprep.subr.mxu0 0.0
    %280 = vmatpush1.msra.mxu0 0.0
    %281 = vmatprep.subr.mxu0 0.0
    %282 = vmatpush1.msra.mxu0 0.0
    %283 = vmatprep.subr.mxu0 0.0
    %284 = vmatpush1.msra.mxu0 0.0
    %285 = vmatprep.subr.mxu0 0.0
    %286 = vmatpush1.msra.mxu0 0.0
    %287 = vmatprep.subr.mxu0 0.0
    %288 = vmatpush1.msra.mxu0 0.0
    %289 = vmatprep.subr.mxu0 0.0
    %290 = vmatpush1.msra.mxu0 0.0
    %291 = vmatprep.subr.mxu0 0.0
    %292 = vmatpush1.msra.mxu0 0.0
    %293 = vmatprep.subr.mxu0 0.0
    %294 = vmatpush1.msra.mxu0 0.0
    %295 = vmatprep.subr.mxu0 0.0
    %296 = vmatpush1.msra.mxu0 0.0
    %297 = vmatprep.subr.mxu0 0.0
    %298 = vmatpush1.msra.mxu0 0.0
    %299 = vmatprep.subr.mxu0 0.0
    %300 = vmatpush1.msra.mxu0 0.0
    %301 = vmatprep.subr.mxu0 0.0
    %302 = vmatpush1.msra.mxu0 0.0
    %303 = vmatprep.subr.mxu0 0.0
    %304 = vmatpush1.msra.mxu0 0.0
    %305 = vmatprep.subr.mxu0 0.0
    %306 = vmatpush1.msra.mxu0 0.0
    %307 = vmatprep.subr.mxu0 0.0
    %308 = vmatpush1.msra.mxu0 0.0
    %309 = vmatprep.subr.mxu0 0.0
    %310 = vmatpush1.msra.mxu0 0.0
    %311 = vmatprep.subr.mxu0 0.0
    %312 = vmatpush1.msra.mxu0 0.0
    %313 = vmatprep.subr.mxu0 0.0
    %314 = vmatpush1.msra.mxu0 0.0
    %315 = vmatprep.subr.mxu0 0.0
    %316 = vmatpush1.msra.mxu0 0.0
    %317 = vmatprep.subr.mxu0 0.0
    %318 = vmatpush1.msra.mxu0 0.0
    %319 = vmatprep.subr.mxu0 0.0
    %320 = vmatpush1.msra.mxu0 0.0
    %321 = vmatprep.mubr.f32.mxu0 0.0
    %322 = vmatmul.mubr.f32.gmra.mrb[0].mxu0 %v252
    %v323 = vpop.f32.mrb[0].mxu0
    %v324 = vadd.f32 0.0, %v323
    %v325 = vpop.f32.mrb[0].mxu0
    %326 = vmatprep.mubr.f32.mxu0 0.0
    %327 = vmatmul.mubr.f32.gmra.mrb[0].mxu0 %v255
    %v328 = vpop.f32.mrb[0].mxu0
    %v329 = vadd.f32 0.0, %v328
    %v330 = vpop.f32.mrb[0].mxu0
    %331 = vdwg.mxu0
    %v332 = vtanh.pop %v324
    %v333 = vtanh.pop %v329
    %334 = vst [vmem:[#allocation7] sm:$0xff] %v332
    %335 = vst [vmem:[#allocation7 + $0x8] sm:$0xff] %v333
    // Predicated region
    $region30: #{tpu_custom_call.1} parent=1 // pred_check
      _
    $region31: #{tpu_custom_call.1} parent=1 // pred_check_branch
      %337 = sbr.rel (0) target = $region33
    $region32: #{tpu_custom_call.1} parent=1 // pred_region
      %s339 = ssub.s32 256, 256
      %340 = vsyncadd [#allocation4], %s339
      %s341 = sshll.u32 [#allocation7], 4
      %s342 = int_to_ptr.vmem [resolvable:$true] %s341
      %347 = dma.vmem_to_hbm [thread:$0]  %s342, 256, %s5, [#allocation4], 128, 128, 8
    $region33: #{tpu_custom_call.1} parent=1 // pred_fallthru
      _
    // Predicated region
    $region34: #{tpu_custom_call.1} parent=1 // pred_check
      _
    $region35: #{tpu_custom_call.1} parent=1 // pred_check_branch
      %349 = sbr.rel (0) target = $region37
    $region36: #{tpu_custom_call.1} parent=1 // pred_region
      %350 = dma.done [#allocation4], 256
    $region37: #{tpu_custom_call.1} parent=1 // pred_fallthru
      _
    %351 = vsyncpa [#allocation3], 1
    %352 = vsyncpa [#allocation6], 1
    %353 = vsyncpa [#allocation4], 1

</llo_original>
